<compile_context>
chip_gen: v5e
topology: v5e:2x2
jax: 0.10.0
libtpu: 0.0.40
codegen_flags: <defaults>
</compile_context>

<pallas_src>
import functools
import math

import jax
import jax.numpy as jnp
from jax import lax
from jax.experimental import pallas as pl
from jax.experimental.pallas import tpu as pltpu


def _pick_tile(n, target, unit):
    """Largest multiple of `unit` dividing n and <= target; n itself if n <= target
    or if no such divisor exists (a full-extent block is always layout-legal)."""
    if n <= target:
        return n
    t = (target // unit) * unit
    while t >= unit:
        if n % t == 0:
            return t
        t -= unit
    return n


def _vmem_limit_bytes():
    # v5e/v6e have 128 MiB physical VMEM -> generous scoped budget; v7x only has
    # 64 MiB physical -> keep the budget tighter (per-generation re-derivation).
    try:
        kind = jax.devices()[0].device_kind.lower()
    except Exception:
        kind = ""
    is_v7 = ("v7" in kind) or ("tpu7" in kind)
    return (48 if is_v7 else 64) * 1024 * 1024


# ----------------------------------------------------------------------------
# Row-tiled projection kernel: o = x @ W + b   (bf16 MXU operands, f32 acc)
# ----------------------------------------------------------------------------
def _proj_kernel(x_ref, w_ref, b_ref, o_ref):
    acc = jnp.dot(x_ref[...], w_ref[...], preferred_element_type=jnp.float32)
    o_ref[...] = (acc + b_ref[...]).astype(o_ref.dtype)


def _project(x, w, b, out_dtype, row_tile=512, vmem_limit=64 * 1024 * 1024):
    rows, d_in = x.shape
    d_out = w.shape[1]
    tr = _pick_tile(rows, row_tile, 8)
    # TODO(synk): mark w/b single-buffered (pipeline_mode=pl.Buffered(1)); they
    #             are grid-invariant, double-buffering them only wastes VMEM.
    return pl.pallas_call(
        _proj_kernel,
        out_shape=jax.ShapeDtypeStruct((rows, d_out), out_dtype),
        grid=(rows // tr,),
        in_specs=[
            pl.BlockSpec((tr, d_in), lambda i: (i, 0)),
            pl.BlockSpec((d_in, d_out), lambda i: (0, 0)),
            pl.BlockSpec((1, d_out), lambda i: (0, 0)),
        ],
        out_specs=pl.BlockSpec((tr, d_out), lambda i: (i, 0)),
        compiler_params=pltpu.CompilerParams(
            dimension_semantics=("parallel",),
            vmem_limit_bytes=vmem_limit,
        ),
    )(x, w, b)


# ----------------------------------------------------------------------------
# Flash-style per-(batch, head) attention kernel with online softmax over Lk.
# ----------------------------------------------------------------------------
def _flash_kernel(*refs, has_mask):
    if has_mask:
        q_ref, k_ref, v_ref, mask_ref, o_ref, m_sc, l_sc, acc_sc = refs
    else:
        q_ref, k_ref, v_ref, o_ref, m_sc, l_sc, acc_sc = refs
        mask_ref = None

    ki = pl.program_id(3)

    @pl.when(ki == 0)
    def _():
        m_sc[...] = jnp.full(m_sc.shape, -jnp.inf, jnp.float32)
        l_sc[...] = jnp.zeros(l_sc.shape, jnp.float32)
        acc_sc[...] = jnp.zeros(acc_sc.shape, jnp.float32)

    q = q_ref[...]       # (TQ, dh) bf16 — 1/sqrt(d_head) already baked into Wq
    k = k_ref[...]       # (TK, dh) bf16
    v = v_ref[...]       # (TK, dh) bf16

    # q @ k^T contracting the last dims (no explicit transpose), f32 accumulate.
    s = lax.dot_general(q, k, (((1,), (1,)), ((), ())),
                        preferred_element_type=jnp.float32)      # (TQ, TK)

    if has_mask:
        # masked_fill(mask, -1e18): mask arrives as int8, converted on the VPU.
        s = jnp.where(mask_ref[...] != 0, jnp.float32(-1e18), s)

    # Online softmax update (f32 VPU/EUP math; v5e has no bf16 VPU/EUP).
    # TODO(synk): on v6e/v7x the exp could run in bf16 for ~2x EUP throughput.
    m_prev = m_sc[...]
    m_new = jnp.maximum(m_prev, jnp.max(s, axis=-1, keepdims=True))
    alpha = jnp.exp(m_prev - m_new)
    p = jnp.exp(s - m_new)
    l_sc[...] = alpha * l_sc[...] + jnp.sum(p, axis=-1, keepdims=True)
    acc_sc[...] = alpha * acc_sc[...] + jnp.dot(
        p.astype(jnp.bfloat16), v, preferred_element_type=jnp.float32)
    m_sc[...] = m_new

    # TODO(synk): dropout on the attention weights is the identity in eval mode.

    @pl.when(ki == pl.num_programs(3) - 1)
    def _():
        inv_l = pl.reciprocal(l_sc[...], approx=True)   # EUP slot, not a divide
        o_ref[...] = (acc_sc[...] * inv_l).astype(o_ref.dtype)


def _flash_attention(qh, kh, vh, mask_i8, tq, tk, vmem_limit):
    B, H, Lq, dh = qh.shape
    Lk = kh.shape[2]
    n_q, n_k = Lq // tq, Lk // tk
    has_mask = mask_i8 is not None

    in_specs = [
        pl.BlockSpec((None, None, tq, dh), lambda b, h, qi, ki: (b, h, qi, 0)),
        pl.BlockSpec((None, None, tk, dh), lambda b, h, qi, ki: (b, h, ki, 0)),
        pl.BlockSpec((None, None, tk, dh), lambda b, h, qi, ki: (b, h, ki, 0)),
    ]
    args = [qh, kh, vh]
    if has_mask:
        in_specs.append(
            pl.BlockSpec((None, tq, tk), lambda b, h, qi, ki: (b, qi, ki)))
        args.append(mask_i8)

    kernel = functools.partial(_flash_kernel, has_mask=has_mask)
    # NOTE: for d_head < 128 the per-step context store is lane-masked; with
    # realistic d_head (64/128) it is (nearly) lane-dense.
    return pl.pallas_call(
        kernel,
        out_shape=jax.ShapeDtypeStruct((B, H, Lq, dh), jnp.bfloat16),
        grid=(B, H, n_q, n_k),
        in_specs=in_specs,
        out_specs=pl.BlockSpec((None, None, tq, dh),
                               lambda b, h, qi, ki: (b, h, qi, 0)),
        scratch_shapes=[
            pltpu.VMEM((tq, 1), jnp.float32),    # running row max
            pltpu.VMEM((tq, 1), jnp.float32),    # running row sum
            pltpu.VMEM((tq, dh), jnp.float32),   # running context accumulator
        ],
        compiler_params=pltpu.CompilerParams(
            dimension_semantics=("parallel", "parallel", "parallel", "arbitrary"),
            vmem_limit_bytes=vmem_limit,
        ),
    )(*args)


# ----------------------------------------------------------------------------
# Full MultiHeadAttention forward (eval mode, no layer_cache).
# ----------------------------------------------------------------------------
def multi_head_attention(query, key, value, params, heads_count, mask=None,
                         tq=None, tk=None):
    """query/key/value: (B, L, D) f32.  params: (wq, bq, wk, bk, wv, bv, wo, bo)
    in x @ W + b layout.  mask: (B, Lq, Lk), nonzero == masked."""
    B, Lq, D = query.shape
    _, Lk, _ = key.shape
    assert D % heads_count == 0
    H = heads_count
    dh = D // H

    if tq is None:
        tq = _pick_tile(Lq, 256, 8)
    if tk is None:
        # The mask block's last (lane) dim == tk -> multiple of 128 (or full Lk).
        tk = _pick_tile(Lk, 512, 128)
    assert Lq % tq == 0 and Lk % tk == 0

    wq, bq, wk, bk, wv, bv, wo, bo = params
    scale = jnp.float32(1.0 / math.sqrt(dh))
    vmem_limit = _vmem_limit_bytes()

    # One-time host prep: bf16 weights + activations (half the DMA bytes),
    # 1/sqrt(d_head) folded into the Q projection, f32 biases.
    wq_bf = (wq * scale).astype(jnp.bfloat16)
    wk_bf = wk.astype(jnp.bfloat16)
    wv_bf = wv.astype(jnp.bfloat16)
    wo_bf = wo.astype(jnp.bfloat16)
    bq_f = (bq * scale).reshape(1, D).astype(jnp.float32)
    bk_f = bk.reshape(1, D).astype(jnp.float32)
    bv_f = bv.reshape(1, D).astype(jnp.float32)
    bo_f = bo.reshape(1, D).astype(jnp.float32)

    q2 = query.astype(jnp.bfloat16).reshape(B * Lq, D)
    k2 = key.astype(jnp.bfloat16).reshape(B * Lk, D)
    v2 = value.astype(jnp.bfloat16).reshape(B * Lk, D)

    # Q/K/V projections — run ONCE (hoisted out of the attention grid).
    qp = _project(q2, wq_bf, bq_f, jnp.bfloat16, vmem_limit=vmem_limit)
    kp = _project(k2, wk_bf, bk_f, jnp.bfloat16, vmem_limit=vmem_limit)
    vp = _project(v2, wv_bf, bv_f, jnp.bfloat16, vmem_limit=vmem_limit)

    # Per-head layout (B, H, L, dh): one cheap XLA transpose so every attention
    # grid step sees a contiguous per-head tile (no in-kernel lane slicing).
    qh = qp.reshape(B, Lq, H, dh).transpose(0, 2, 1, 3)
    kh = kp.reshape(B, Lk, H, dh).transpose(0, 2, 1, 3)
    vh = vp.reshape(B, Lk, H, dh).transpose(0, 2, 1, 3)

    mask_i8 = None
    if mask is not None:
        # int8 mask: 4x less HBM traffic / VMEM than an f32 additive bias.
        # TODO(synk): for causal masks this could be generated in-kernel from
        #             broadcasted_iota with zero HBM traffic.
        mask_i8 = (mask != 0).astype(jnp.int8)

    ctx = _flash_attention(qh, kh, vh, mask_i8, tq, tk, vmem_limit)  # (B,H,Lq,dh) bf16

    # (B, H, Lq, dh) -> (B*Lq, D), then the lane-dense output projection.
    ctx2 = ctx.transpose(0, 2, 1, 3).reshape(B * Lq, D)
    out = _project(ctx2, wo_bf, bo_f, query.dtype, vmem_limit=vmem_limit)
    return out.reshape(B, Lq, D)


# ----------------------------------------------------------------------------
# Pure-JAX f32 reference mirroring the PyTorch forward (eval mode).
# ----------------------------------------------------------------------------
def mha_reference(query, key, value, params, heads_count, mask=None):
    B, Lq, D = query.shape
    _, Lk, _ = key.shape
    d_head = D // heads_count
    wq, bq, wk, bk, wv, bv, wo, bo = params
    qp = query @ wq + bq
    kp = key @ wk + bk
    vp = value @ wv + bv
    qh = qp.reshape(B, Lq, heads_count, d_head).transpose(0, 2, 1, 3)
    kh = kp.reshape(B, Lk, heads_count, d_head).transpose(0, 2, 1, 3)
    vh = vp.reshape(B, Lk, heads_count, d_head).transpose(0, 2, 1, 3)
    scores = jnp.einsum("bhqd,bhkd->bhqk", qh, kh) / jnp.sqrt(jnp.float32(d_head))
    if mask is not None:
        scores = jnp.where(mask[:, None, :, :] != 0, -1e18, scores)
    attn = jax.nn.softmax(scores, axis=3)
    ctx = jnp.einsum("bhqk,bhkd->bhqd", attn, vh)
    ctx = ctx.transpose(0, 2, 1, 3).reshape(B, Lq, D)
    return ctx @ wo + bo


def init_params(key, d_model):
    """Deterministic Linear-style init: U(-1/sqrt(d), 1/sqrt(d)) for W and b."""
    bound = 1.0 / math.sqrt(d_model)
    ks = jax.random.split(key, 8)

    def u(k, shape):
        return jax.random.uniform(k, shape, jnp.float32, -bound, bound)

    wq, wk, wv, wo = (u(ks[i], (d_model, d_model)) for i in range(4))
    bq, bk, bv, bo = (u(ks[4 + i], (d_model,)) for i in range(4))
    return (wq, bq, wk, bk, wv, bv, wo, bo)


if __name__ == "__main__":
    heads_count = 4
    d_model = 32          # d_head = 8
    batch = 2
    seq = 8

    root = jax.random.PRNGKey(0)
    k_par, k_q, k_k, k_v = jax.random.split(root, 4)

    params = init_params(k_par, d_model)
    query = jax.random.normal(k_q, (batch, seq, d_model), jnp.float32)
    key = jax.random.normal(k_k, (batch, seq, d_model), jnp.float32)
    value = jax.random.normal(k_v, (batch, seq, d_model), jnp.float32)

    # 1) no-mask path (no mask tensor is materialised / DMA'd at all)
    out = multi_head_attention(query, key, value, params, heads_count, mask=None)
    out = jax.block_until_ready(out)
    ref = mha_reference(query, key, value, params, heads_count, mask=None)
    assert out.shape == (batch, seq, d_model)
    assert jnp.allclose(out, ref, atol=3e-2, rtol=3e-2), "mismatch (no mask)"

    # 2) masked path (causal mask, nonzero == masked)
    causal = (jnp.arange(seq)[None, :] > jnp.arange(seq)[:, None]).astype(jnp.int32)
    mask = jnp.broadcast_to(causal, (batch, seq, seq))
    out_m = multi_head_attention(query, key, value, params, heads_count, mask=mask)
    out_m = jax.block_until_ready(out_m)
    ref_m = mha_reference(query, key, value, params, heads_count, mask=mask)
    assert jnp.allclose(out_m, ref_m, atol=3e-2, rtol=3e-2), "mismatch (masked)"

    print("KERNEL_OK")
</pallas_src>

<mosaic_0001>
module attributes {stable_mosaic.version = 11 : i64} {
  func.func @_proj_kernel(%arg0: i32, %arg1: memref<16x32xbf16, #tpu.memory_space<vmem>>, %arg2: memref<32x32xbf16, #tpu.memory_space<vmem>>, %arg3: memref<1x32xf32, #tpu.memory_space<vmem>>, %arg4: memref<16x32xbf16, #tpu.memory_space<vmem>>) attributes {dimension_semantics = [#tpu.dimension_semantics<parallel>], iteration_bounds = array<i64: 1>, scalar_prefetch = 0 : i64, scratch_operands = 0 : i64, tpu.core_type = #tpu.core_type<tc>, window_params = [{transform_indices = @transform_0, window_bounds = array<i64: 16, 32>}, {pipeline_mode = #tpu.pipeline_mode<synchronous>, transform_indices = @transform_1, window_bounds = array<i64: 32, 32>}, {pipeline_mode = #tpu.pipeline_mode<synchronous>, transform_indices = @transform_2, window_bounds = array<i64: 1, 32>}, {transform_indices = @transform_3, window_bounds = array<i64: 16, 32>}]} {
    %c0 = arith.constant 0 : index
    %c0_0 = arith.constant 0 : index
    %0 = vector.load %arg1[%c0, %c0_0] : memref<16x32xbf16, #tpu.memory_space<vmem>>, vector<16x32xbf16>
    %c0_1 = arith.constant 0 : index
    %c0_2 = arith.constant 0 : index
    %1 = vector.load %arg2[%c0_1, %c0_2] : memref<32x32xbf16, #tpu.memory_space<vmem>>, vector<32x32xbf16>
    %cst = arith.constant dense<0.000000e+00> : vector<16x32xf32>
    %2 = tpu.matmul %0, %1, %cst {dimension_numbers = #tpu.dot_dimension_numbers<[1], [0], [0], [1], [0, 0, 1, 1], [], []>} : vector<16x32xbf16>, vector<32x32xbf16>, vector<16x32xf32> -> vector<16x32xf32>
    %c0_3 = arith.constant 0 : index
    %c0_4 = arith.constant 0 : index
    %3 = vector.load %arg3[%c0_3, %c0_4] : memref<1x32xf32, #tpu.memory_space<vmem>>, vector<1x32xf32>
    %4 = vector.broadcast %3 : vector<1x32xf32> to vector<16x32xf32>
    %5 = arith.addf %2, %4 : vector<16x32xf32>
    %6 = arith.truncf %5 : vector<16x32xf32> to vector<16x32xbf16>
    %c0_5 = arith.constant 0 : index
    %c0_6 = arith.constant 0 : index
    %7 = vector.load %arg4[%c0_5, %c0_6] : memref<16x32xbf16, #tpu.memory_space<vmem>>, vector<16x32xbf16>
    tpu.vector_store %arg4[%c0_5, %c0_6], %6 {strides = array<i32>} : memref<16x32xbf16, #tpu.memory_space<vmem>>, vector<16x32xbf16>,
    return
  }
  func.func @transform_0(%arg0: i32) -> (i32, i32) {
    %c0_i32 = arith.constant 0 : i32
    %c0_i32_0 = arith.constant 0 : i32
    return %arg0, %c0_i32 : i32, i32
  }
  func.func @transform_1(%arg0: i32) -> (i32, i32) {
    %c0_i32 = arith.constant 0 : i32
    %c0_i32_0 = arith.constant 0 : i32
    %c0_i32_1 = arith.constant 0 : i32
    return %c0_i32, %c0_i32_0 : i32, i32
  }
  func.func @transform_2(%arg0: i32) -> (i32, i32) {
    %c0_i32 = arith.constant 0 : i32
    %c0_i32_0 = arith.constant 0 : i32
    %c0_i32_1 = arith.constant 0 : i32
    return %c0_i32, %c0_i32_0 : i32, i32
  }
  func.func @transform_3(%arg0: i32) -> (i32, i32) {
    %c0_i32 = arith.constant 0 : i32
    %c0_i32_0 = arith.constant 0 : i32
    return %arg0, %c0_i32 : i32, i32
  }
}

</mosaic_0001>

<llo_original>
// kernel: tpu_custom_call.1
$region0: #{tpu_custom_call.1}
  #allocation0 [shape = 'u32[]', space=smem, size = 0x4, offset = 0x4, fixed_abs, tag = 'smem constant byte address 0x4 - core index']
  #allocation1 [shape = 'u32[72,128]{1,0:T(1,128)}', space=vmem, size = 0x9000, scoped, tag = 'internal scratch']
  %s0 = inlined_call_operand.hbm [shape: bf16[16,32], index: 0, kind: input, shape index: {}]
  %s1 = inlined_call_operand.hbm [shape: bf16[32,32], index: 1, kind: input, shape index: {}]
  %s2 = inlined_call_operand.vmem [shape: f32[1,32], index: 2, kind: input, shape index: {}]
  %s3 = inlined_call_operand.hbm [shape: bf16[16,32], index: 3, kind: output, shape index: {}]
  %s4 = sld [smem:[#allocation0]]
  $region30: #{tpu_custom_call.1} parent=0
    _
  %s6 = ssub.s32 1, %s4
  %s7 = scalar_select 0, %s6, %s4
  $region1: #{tpu_custom_call.1} parent=0
    #allocation2 [shape = 'u8[4096]{0}', space=vmem, size = 0x1000, scoped, tag = 'input window, operand 0, single buffered']
    #allocation3 [shape = 's32[1]{0}', space=sflag, size = 0x4, scoped, tag = 'scoped memory for tpu_custom_call.1']
    #allocation4 [shape = 's32[1]{0}', space=sflag, size = 0x4, scoped, tag = 'scoped memory for tpu_custom_call.1']
    #allocation5 [shape = 'u8[8192]{0}', space=vmem, size = 0x2000, scoped, tag = 'input window, operand 1, single buffered']
    #allocation6 [shape = 's32[1]{0}', space=sflag, size = 0x4, scoped, tag = 'scoped memory for tpu_custom_call.1']
    #allocation7 [shape = 'u8[4096]{0}', space=vmem, size = 0x1000, scoped, tag = 'output window, operand 0, single buffered']
    %8 = vsyncpa [#allocation3], 0
    %9 = vsyncpa [#allocation6], 0
    %10 = vsyncpa [#allocation4], 0
    // Predicated region
    $region2: #{tpu_custom_call.1} parent=1 // pred_check
      _
    $region3: #{tpu_custom_call.1} parent=1 // pred_check_branch
      %12 = sbr.rel (0) target = $region5
    $region4: #{tpu_custom_call.1} parent=1 // pred_region
      %14 = vsyncadd [#allocation3], 0
      %s15 = sshll.u32 %s0, 4
      %s16 = int_to_ptr.hbm [resolvable:$true] %s15
      %s17 = sshll.u32 [#allocation2], 4
      %s18 = int_to_ptr.vmem [resolvable:$true] %s17
      %23 = dma.hbm_to_vmem [thread:$0]  %s16, 128, %s18, [#allocation3], 64, 64, 4
    $region5: #{tpu_custom_call.1} parent=1 // pred_fallthru
      _
    // Predicated region
    $region6: #{tpu_custom_call.1} parent=1 // pred_check
      _
    $region7: #{tpu_custom_call.1} parent=1 // pred_check_branch
      %25 = sbr.rel (0) target = $region9
    $region8: #{tpu_custom_call.1} parent=1 // pred_region
      %27 = vsyncadd [#allocation6], 0
      %s28 = sshll.u32 %s1, 4
      %s29 = int_to_ptr.hbm [resolvable:$true] %s28
      %s30 = sshll.u32 [#allocation5], 4
      %s31 = int_to_ptr.vmem [resolvable:$true] %s30
      %36 = dma.hbm_to_vmem [thread:$0]  %s29, 256, %s31, [#allocation6], 64, 64, 4
    $region9: #{tpu_custom_call.1} parent=1 // pred_fallthru
      _
    // Predicated region
    $region10: #{tpu_custom_call.1} parent=1 // pred_check
      _
    $region11: #{tpu_custom_call.1} parent=1 // pred_check_branch
      %38 = sbr.rel (0) target = $region13
    $region12: #{tpu_custom_call.1} parent=1 // pred_region
      _
    $region13: #{tpu_custom_call.1} parent=1 // pred_fallthru
      _
    // Predicated region
    $region14: #{tpu_custom_call.1} parent=1 // pred_check
      _
    $region15: #{tpu_custom_call.1} parent=1 // pred_check_branch
      %40 = sbr.rel (0) target = $region17
    $region16: #{tpu_custom_call.1} parent=1 // pred_region
      %42 = dma.done [#allocation3], 128
    $region17: #{tpu_custom_call.1} parent=1 // pred_fallthru
      _
    // Predicated region
    $region18: #{tpu_custom_call.1} parent=1 // pred_check
      _
    $region19: #{tpu_custom_call.1} parent=1 // pred_check_branch
      %44 = sbr.rel (0) target = $region21
    $region20: #{tpu_custom_call.1} parent=1 // pred_region
      %46 = dma.done [#allocation6], 256
    $region21: #{tpu_custom_call.1} parent=1 // pred_fallthru
      _
    %v48 = vld [vmem:[#allocation2] sm:$0xf]
    %v49 = vld [vmem:[#allocation2 + $0x4] sm:$0xf]
    %v50 = vld [vmem:[#allocation5] sm:$0xf]
    %v51 = vld [vmem:[#allocation5 + $0x4] sm:$0xf]
    %v52 = vld [vmem:[#allocation5 + $0x8] sm:$0xf]
    %v53 = vld [vmem:[#allocation5 + $0xc] sm:$0xf]
    %v54 = vld [vmem:[%s2] sm:$0x1]
    %v56 = vperm.slane %v54, 0
    %v60 = vunpack.c.l.b16 %v48
    %v61 = vunpack.c.l.b16 %v49
    %v62 = vpack.c.b16 %v61, %v60
    %v67 = vunpack.c.l.b16 %v50
    %v68 = vunpack.c.l.b16 %v51
    %v69 = vunpack.c.l.b16 %v52
    %v70 = vunpack.c.l.b16 %v53
    %v71 = vpack.c.b16 %v68, %v67
    %v72 = vpack.c.b16 %v70, %v69
    %vm75 = vcmask 261120
    %v77 = vsel %vm75, %v62, 0
    %79 = vmatpush.bf16.msra.mxu0 0
    %80 = vmatpush.bf16.msra.mxu0 0
    %81 = vmatpush.bf16.msra.mxu0 0
    %82 = vmatpush.bf16.msra.mxu0 0
    %83 = vmatpush.bf16.msra.mxu0 0
    %84 = vmatpush.bf16.msra.mxu0 0
    %85 = vmatpush.bf16.msra.mxu0 %v72
    %86 = vmatpush.bf16.msra.mxu0 %v71
    %87 = vmatmul.bf16.gmra.mxu0 %v77
    %v88 = vpop.f32.mrf.mxu0
    %v89 = vadd.f32 %v56, %v88
    %v90 = vpop.f32.mrf.mxu0
    %v91 = vadd.f32 %v56, %v90
    %92 = vdwg.mxu0
    %v93 = vpack.c.bf16 %v89, %v89
    %v94 = vpack.c.bf16 %v91, %v91
    %vm95 = vcmask 257024
    %96 = vst.msk [vmem:[#allocation7] sm:$0xf] %vm95, %v93
    %97 = vst.msk [vmem:[#allocation7 + $0x4] sm:$0xf] %vm95, %v94
    // Predicated region
    $region22: #{tpu_custom_call.1} parent=1 // pred_check
      _
    $region23: #{tpu_custom_call.1} parent=1 // pred_check_branch
      %99 = sbr.rel (0) target = $region25
    $region24: #{tpu_custom_call.1} parent=1 // pred_region
      %101 = vsyncadd [#allocation4], 0
      %s102 = sshll.u32 [#allocation7], 4
      %s103 = int_to_ptr.vmem [resolvable:$true] %s102
      %s104 = sshll.u32 %s3, 4
      %s105 = int_to_ptr.hbm [resolvable:$true] %s104
      %110 = dma.vmem_to_hbm [thread:$0]  %s103, 128, %s105, [#allocation4], 64, 64, 4
    $region25: #{tpu_custom_call.1} parent=1 // pred_fallthru
      _
    // Predicated region
    $region26: #{tpu_custom_call.1} parent=1 // pred_check
      _
    $region27: #{tpu_custom_call.1} parent=1 // pred_check_branch
      %112 = sbr.rel (0) target = $region29
    $region28: #{tpu_custom_call.1} parent=1 // pred_region
      %114 = dma.done [#allocation4], 128
    $region29: #{tpu_custom_call.1} parent=1 // pred_fallthru
      _
    %115 = vsyncpa [#allocation3], 1
    %116 = vsyncpa [#allocation6], 1
    %117 = vsyncpa [#allocation4], 1

</llo_original>
